<compile_context>
chip_gen: v5e
topology: v5e:2x2
jax: 0.10.0
libtpu: 0.0.40
codegen_flags: <defaults>
</compile_context>

<pallas_src>
import functools

import jax
import jax.numpy as jnp
import numpy as np
from jax import lax
from jax.experimental import pallas as pl
from jax.experimental.pallas import tpu as pltpu

TM_DEFAULT = 512      # output-position rows per grid step (sweep 256/512/1024)
TK_MAX = 2048         # max reduction width per grid step (multiple of 128)
LANE = 128


def _round_up(x, m):
    return (x + m - 1) // m * m


# ----------------------------- Pallas kernel --------------------------------

def _gemm_bias_kernel(p_ref, w_ref, b_ref, o_ref, acc_ref):
    """One (TM, TK) x (TK, Coutp) MXU step of the im2col GEMM.

    p_ref / w_ref are bf16 (MXU operands); accumulation is f32 in VMEM
    scratch; bias add + final store happen once on the last K step.
    """
    k = pl.program_id(1)

    @pl.when(k == 0)
    def _():
        acc_ref[...] = jnp.zeros_like(acc_ref)

    acc_ref[...] += jnp.dot(p_ref[...], w_ref[...],
                            preferred_element_type=jnp.float32)

    @pl.when(k == pl.num_programs(1) - 1)
    def _():
        o_ref[...] = (acc_ref[...] + b_ref[...]).astype(o_ref.dtype)


def _gemm_bias(pmat, wmat, bias, *, tm):
    """pmat: (Mp, Kp) bf16, wmat: (Kp, Coutp) bf16, bias: (1, Coutp) f32."""
    Mp, Kp = pmat.shape
    Coutp = wmat.shape[1]
    tk = Kp if Kp <= TK_MAX else TK_MAX
    assert Mp % tm == 0 and Kp % tk == 0

    # Per-step VMEM estimate: double-buffered bf16 inputs + f32 acc + f32 out.
    vmem_bytes = (2 * tm * tk * 2 + 2 * tk * Coutp * 2
                  + tm * Coutp * 4 + 2 * tm * Coutp * 4)
    vmem_limit = int(min(max(2 * vmem_bytes, 32 * 1024 * 1024),
                         56 * 1024 * 1024))   # stay under v7x 64 MiB physical

    return pl.pallas_call(
        _gemm_bias_kernel,
        out_shape=jax.ShapeDtypeStruct((Mp, Coutp), jnp.float32),
        grid=(Mp // tm, Kp // tk),
        in_specs=[
            pl.BlockSpec((tm, tk), lambda i, k: (i, k)),
            pl.BlockSpec((tk, Coutp), lambda i, k: (k, 0)),
            pl.BlockSpec((1, Coutp), lambda i, k: (0, 0)),
        ],
        out_specs=pl.BlockSpec((tm, Coutp), lambda i, k: (i, 0)),
        scratch_shapes=[pltpu.VMEM((tm, Coutp), jnp.float32)],
        compiler_params=pltpu.CompilerParams(
            dimension_semantics=("parallel", "arbitrary"),
            vmem_limit_bytes=vmem_limit),
    )(pmat, wmat, bias)


# ------------------------------- JAX glue -----------------------------------

def _im2col_taps_last(x_ncdhw):
    """NCDHW -> (M, 27*C) bf16 patch matrix; K ordered (tap, channel).

    Built channel-last so the final reshape is a no-op (single HBM
    materialization, already in bf16)."""
    N, C, D, H, W = x_ncdhw.shape
    Do, Ho, Wo = (D - 1) // 2 + 1, (H - 1) // 2 + 1, (W - 1) // 2 + 1
    x = jnp.transpose(x_ncdhw, (0, 2, 3, 4, 1)).astype(jnp.bfloat16)   # NDHWC
    xp = jnp.pad(x, ((0, 0), (1, 1), (1, 1), (1, 1), (0, 0)))
    taps = []
    for kd in range(3):
        for kh in range(3):
            for kw in range(3):
                taps.append(xp[:, kd:kd + 2 * Do:2,
                               kh:kh + 2 * Ho:2,
                               kw:kw + 2 * Wo:2, :])
    patches = jnp.stack(taps, axis=4)                  # (N, Do, Ho, Wo, 27, C)
    M = N * Do * Ho * Wo
    return patches.reshape(M, 27 * C), (Do, Ho, Wo)


@functools.partial(jax.jit, static_argnames=("cout", "tm"))
def _downsample_forward(x, wmat, bias, *, cout, tm):
    N, C, D, H, W = x.shape
    pmat, (Do, Ho, Wo) = _im2col_taps_last(x)          # (M, 27C) bf16
    M, K = pmat.shape
    Kp = wmat.shape[0]
    Mp = _round_up(M, tm)
    if Kp > K:                                          # K split: zero-pad K
        pmat = jnp.pad(pmat, ((0, 0), (0, Kp - K)))
    if Mp > M:                                          # ragged last M tile
        pmat = jnp.pad(pmat, ((0, Mp - M), (0, 0)))
    out = _gemm_bias(pmat, wmat, bias, tm=tm)           # (Mp, Coutp) f32
    out = out[:M, :cout].reshape(N, Do, Ho, Wo, cout)
    return jnp.transpose(out, (0, 4, 1, 2, 3)).astype(x.dtype)   # NCDHW


# --------------------------- weight preparation ------------------------------

def _pad_gemm_weights(wmat, bias):
    """Pad K up to a multiple of the K tile and Cout up to a lane multiple."""
    K, Cout = wmat.shape
    Kp = K if K <= TK_MAX else _round_up(K, TK_MAX)
    Coutp = _round_up(Cout, LANE)
    wmat = jnp.pad(wmat, ((0, Kp - K), (0, Coutp - Cout))).astype(jnp.bfloat16)
    bias = jnp.pad(bias.astype(jnp.float32), (0, Coutp - Cout)).reshape(1, Coutp)
    return wmat, bias


def _prep_dense_weights(w, b):
    """w: (Cout, C, 3, 3, 3), b: (Cout,) -> bf16 (Kp, Coutp), f32 (1, Coutp)."""
    Cout, C = w.shape[0], w.shape[1]
    # K order = (tap, channel) to match _im2col_taps_last.
    wmat = jnp.transpose(w.reshape(Cout, C, 27), (2, 1, 0)).reshape(27 * C, Cout)
    return _pad_gemm_weights(wmat, b)


def _prep_dwsep_weights(w_dw, b_dw, w_pw, b_pw):
    """Fold depthwise(3,3,3 s2) + pointwise(1x1x1) into one GEMM."""
    C = w_dw.shape[0]
    Cout = w_pw.shape[0]
    wdw = w_dw.reshape(C, 27).T                         # (27, C): wdw[t, c]
    wpw = w_pw.reshape(Cout, C)                         # (Cout, C)
    w_eff = wdw[:, :, None] * wpw.T[None, :, :]         # (27, C, Cout)
    w_eff = w_eff.reshape(27 * C, Cout)
    b_eff = wpw @ b_dw + b_pw
    return _pad_gemm_weights(w_eff, b_eff)


# --------------------------- module equivalent -------------------------------

def _uniform(key, shape, bound):
    return jax.random.uniform(key, shape, jnp.float32, -bound, bound)


class Downsample:
    """JAX/Pallas equivalent of the PyTorch Downsample module (k=3, s=2, p=1)."""

    def __init__(self, n_channels, depthwise_separable=False,
                 key=jax.random.PRNGKey(0), tm=TM_DEFAULT):
        self.depthwise_separable = depthwise_separable
        self.n_channels = n_channels
        self.tm = tm
        C = n_channels
        k0, k1, k2, k3 = jax.random.split(key, 4)
        if depthwise_separable:
            bd = 1.0 / np.sqrt(1 * 27)          # depthwise fan_in = 1*3*3*3
            bp = 1.0 / np.sqrt(C)               # pointwise fan_in = C
            self.w_dw = _uniform(k0, (C, 1, 3, 3, 3), bd)
            self.b_dw = _uniform(k1, (C,), bd)
            self.w_pw = _uniform(k2, (C, C, 1, 1, 1), bp)
            self.b_pw = _uniform(k3, (C,), bp)
            self._wmat, self._bias = _prep_dwsep_weights(
                self.w_dw, self.b_dw, self.w_pw, self.b_pw)
        else:
            bc = 1.0 / np.sqrt(C * 27)          # fan_in = C*3*3*3
            self.w = _uniform(k0, (C, C, 3, 3, 3), bc)
            self.b = _uniform(k1, (C,), bc)
            self._wmat, self._bias = _prep_dense_weights(self.w, self.b)

    def __call__(self, x):
        return _downsample_forward(x, self._wmat, self._bias,
                                   cout=self.n_channels, tm=self.tm)


# ------------------------------- reference -----------------------------------

def _ref_dense(x, w, b):
    y = lax.conv_general_dilated(
        x, w, window_strides=(2, 2, 2), padding=((1, 1),) * 3,
        dimension_numbers=("NCDHW", "OIDHW", "NCDHW"))
    return y + b.reshape(1, -1, 1, 1, 1)


def _ref_dwsep(x, w_dw, b_dw, w_pw, b_pw):
    C = x.shape[1]
    y = lax.conv_general_dilated(
        x, w_dw, window_strides=(2, 2, 2), padding=((1, 1),) * 3,
        dimension_numbers=("NCDHW", "OIDHW", "NCDHW"), feature_group_count=C)
    y = y + b_dw.reshape(1, -1, 1, 1, 1)
    z = lax.conv_general_dilated(
        y, w_pw, window_strides=(1, 1, 1), padding=((0, 0),) * 3,
        dimension_numbers=("NCDHW", "OIDHW", "NCDHW"))
    return z + b_pw.reshape(1, -1, 1, 1, 1)


if __name__ == "__main__":
    key = jax.random.PRNGKey(0)
    kx, kp1, kp2 = jax.random.split(key, 3)

    N, C, D, H, W = 2, 4, 16, 16, 16
    x = jax.random.normal(kx, (N, C, D, H, W), jnp.float32)

    # Tolerances account for bf16 MXU operands (accumulation stays f32).
    ATOL = RTOL = 2e-2

    # Default path: plain Conv3d(C, C, 3, stride=2, pad=1)
    mod = Downsample(C, depthwise_separable=False, key=kp1)
    y = jax.block_until_ready(mod(x))
    y_ref = jax.block_until_ready(_ref_dense(x, mod.w, mod.b))
    assert y.shape == (N, C, D // 2, H // 2, W // 2), y.shape
    np.testing.assert_allclose(np.asarray(y), np.asarray(y_ref),
                               atol=ATOL, rtol=RTOL)

    # Depthwise-separable path (DepthSepConv3d), folded into a single GEMM.
    mod_ds = Downsample(C, depthwise_separable=True, key=kp2)
    y_ds = jax.block_until_ready(mod_ds(x))
    y_ds_ref = jax.block_until_ready(
        _ref_dwsep(x, mod_ds.w_dw, mod_ds.b_dw, mod_ds.w_pw, mod_ds.b_pw))
    assert y_ds.shape == (N, C, D // 2, H // 2, W // 2), y_ds.shape
    np.testing.assert_allclose(np.asarray(y_ds), np.asarray(y_ds_ref),
                               atol=ATOL, rtol=RTOL)

    print("KERNEL_OK")
</pallas_src>

<mosaic_0001>
module attributes {stable_mosaic.version = 11 : i64} {
  func.func @_gemm_bias_kernel(%arg0: i32, %arg1: i32, %arg2: memref<512x108xbf16, #tpu.memory_space<vmem>>, %arg3: memref<108x128xbf16, #tpu.memory_space<vmem>>, %arg4: memref<1x128xf32, #tpu.memory_space<vmem>>, %arg5: memref<512x128xf32, #tpu.memory_space<vmem>>, %arg6: memref<512x128xf32, #tpu.memory_space<vmem>>) attributes {dimension_semantics = [#tpu.dimension_semantics<parallel>, #tpu.dimension_semantics<arbitrary>], iteration_bounds = array<i64: 2, 1>, scalar_prefetch = 0 : i64, scratch_operands = 1 : i64, tpu.core_type = #tpu.core_type<tc>, window_params = [{transform_indices = @transform_0, window_bounds = array<i64: 512, 108>}, {transform_indices = @transform_1, window_bounds = array<i64: 108, 128>}, {pipeline_mode = #tpu.pipeline_mode<synchronous>, transform_indices = @transform_2, window_bounds = array<i64: 1, 128>}, {transform_indices = @transform_3, window_bounds = array<i64: 512, 128>}]} {
    %c0_i32 = arith.constant 0 : i32
    %0 = arith.cmpi eq, %arg1, %c0_i32 : i32
    %1 = arith.extui %0 : i1 to i32
    %c0_i32_0 = arith.constant 0 : i32
    %2 = arith.cmpi ne, %1, %c0_i32_0 : i32
    scf.if %2 {
      %cst_10 = arith.constant 0.000000e+00 : f32
      %12 = vector.broadcast %cst_10 : f32 to vector<512x128xf32>
      %c0_11 = arith.constant 0 : index
      %c0_12 = arith.constant 0 : index
      %13 = vector.load %arg6[%c0_11, %c0_12] : memref<512x128xf32, #tpu.memory_space<vmem>>, vector<512x128xf32>
      tpu.vector_store %arg6[%c0_11, %c0_12], %12 {strides = array<i32>} : memref<512x128xf32, #tpu.memory_space<vmem>>, vector<512x128xf32>,
    } else {
    }
    %c0 = arith.constant 0 : index
    %c0_1 = arith.constant 0 : index
    %3 = vector.load %arg6[%c0, %c0_1] : memref<512x128xf32, #tpu.memory_space<vmem>>, vector<512x128xf32>
    %c0_2 = arith.constant 0 : index
    %c0_3 = arith.constant 0 : index
    %4 = vector.load %arg2[%c0_2, %c0_3] : memref<512x108xbf16, #tpu.memory_space<vmem>>, vector<512x108xbf16>
    %c0_4 = arith.constant 0 : index
    %c0_5 = arith.constant 0 : index
    %5 = vector.load %arg3[%c0_4, %c0_5] : memref<108x128xbf16, #tpu.memory_space<vmem>>, vector<108x128xbf16>
    %cst = arith.constant dense<0.000000e+00> : vector<512x128xf32>
    %6 = tpu.matmul %4, %5, %cst {dimension_numbers = #tpu.dot_dimension_numbers<[1], [0], [0], [1], [0, 0, 1, 1], [], []>} : vector<512x108xbf16>, vector<108x128xbf16>, vector<512x128xf32> -> vector<512x128xf32>
    %7 = arith.addf %3, %6 : vector<512x128xf32>
    %c0_6 = arith.constant 0 : index
    %c0_7 = arith.constant 0 : index
    %8 = vector.load %arg6[%c0_6, %c0_7] : memref<512x128xf32, #tpu.memory_space<vmem>>, vector<512x128xf32>
    tpu.vector_store %arg6[%c0_6, %c0_7], %7 {strides = array<i32>} : memref<512x128xf32, #tpu.memory_space<vmem>>, vector<512x128xf32>,
    %c0_i32_8 = arith.constant 0 : i32
    %9 = arith.cmpi eq, %arg1, %c0_i32_8 : i32
    %10 = arith.extui %9 : i1 to i32
    %c0_i32_9 = arith.constant 0 : i32
    %11 = arith.cmpi ne, %10, %c0_i32_9 : i32
    scf.if %11 {
      %c0_10 = arith.constant 0 : index
      %c0_11 = arith.constant 0 : index
      %12 = vector.load %arg6[%c0_10, %c0_11] : memref<512x128xf32, #tpu.memory_space<vmem>>, vector<512x128xf32>
      %c0_12 = arith.constant 0 : index
      %c0_13 = arith.constant 0 : index
      %13 = vector.load %arg4[%c0_12, %c0_13] : memref<1x128xf32, #tpu.memory_space<vmem>>, vector<1x128xf32>
      %14 = vector.broadcast %13 : vector<1x128xf32> to vector<512x128xf32>
      %15 = arith.addf %12, %14 : vector<512x128xf32>
      %c0_14 = arith.constant 0 : index
      %c0_15 = arith.constant 0 : index
      %16 = vector.load %arg5[%c0_14, %c0_15] : memref<512x128xf32, #tpu.memory_space<vmem>>, vector<512x128xf32>
      tpu.vector_store %arg5[%c0_14, %c0_15], %15 {strides = array<i32>} : memref<512x128xf32, #tpu.memory_space<vmem>>, vector<512x128xf32>,
    } else {
    }
    return
  }
  func.func @transform_0(%arg0: i32, %arg1: i32) -> (i32, i32) {
    %c0_i32 = arith.constant 0 : i32
    return %arg0, %arg1 : i32, i32
  }
  func.func @transform_1(%arg0: i32, %arg1: i32) -> (i32, i32) {
    %c0_i32 = arith.constant 0 : i32
    %c0_i32_0 = arith.constant 0 : i32
    return %arg1, %c0_i32 : i32, i32
  }
  func.func @transform_2(%arg0: i32, %arg1: i32) -> (i32, i32) {
    %c0_i32 = arith.constant 0 : i32
    %c0_i32_0 = arith.constant 0 : i32
    %c0_i32_1 = arith.constant 0 : i32
    return %c0_i32, %c0_i32_0 : i32, i32
  }
  func.func @transform_3(%arg0: i32, %arg1: i32) -> (i32, i32) {
    %c0_i32 = arith.constant 0 : i32
    %c0_i32_0 = arith.constant 0 : i32
    return %arg0, %c0_i32 : i32, i32
  }
}

</mosaic_0001>

<llo_original>
// kernel: _downsample_forward.1
$region0: #{_downsample_forward.1}
  #allocation0 [shape = 'u32[]', space=smem, size = 0x4, offset = 0x4, fixed_abs, tag = 'smem constant byte address 0x4 - core index']
  #allocation1 [shape = 'u32[72,128]{1,0:T(1,128)}', space=vmem, size = 0x9000, scoped, tag = 'internal scratch']
  #allocation2 [shape = 'f32[512,128]{1,0:T(8,128)}', space=vmem, size = 0x40000, scoped, tag = 'scratch operand']
  %s0 = inlined_call_operand.vmem [shape: bf16[1024,108], index: 0, kind: input, shape index: {}]
  %s1 = inlined_call_operand.vmem [shape: bf16[108,128], index: 1, kind: input, shape index: {}]
  %s2 = inlined_call_operand.vmem [shape: f32[1,128], index: 2, kind: input, shape index: {}]
  %s3 = inlined_call_operand.vmem [shape: f32[1024,128], index: 3, kind: output, shape index: {}]
  %s4 = sld [smem:[#allocation0]]
  $region53: #{_downsample_forward.1} parent=0
    _
  %s6 = ssub.s32 1, %s4
  %s7 = scalar_select 0, %s6, %s4
  loop: start=0, step=1, limit=4
  $region2: #{_downsample_forward.1} parent=0 // loop_pre_header
    _
  $region3: #{_downsample_forward.1} parent=0 // loop_header
    %s9 = sphi 0, %s13
    %p10 = scmp.ge.s32.totalorder %s9, 4
    %s16 = sphi 0, %s28
    %s17 = sphi 0, %s24
    %s18 = sphi 0, %s16
    %s19 = sphi 0, %s17
    %s20 = sphi 0, %s18
    %s21 = sphi 0, %s19
    %s33 = sphi 0, %s35
    %s36 = sphi 0, %s33
    %s37 = sphi 0, %s36
    %s53 = sphi 0, %s37
    %s59 = sphi 0, %s61
    %s62 = sphi 0, %s59
    %s63 = sphi 0, %s62
    %s79 = sphi 0, %s63
    %s83 = sphi 0, %s83
    %s85 = sphi 0, %s83
    %s86 = sphi 0, %s85
    %s100 = sphi 0, %s86
    %s106 = sphi 0, %s108
    %s109 = sphi 0, %s106
    %s110 = sphi 0, %s109
    %s126 = sphi 0, %s110
  $region4: #{_downsample_forward.1} parent=0 // loop_header_branch
    %12 = sbr.rel (%p10) target = $region8
  $region5: #{_downsample_forward.1} parent=0 // loop_body
    %s14 = ssub.s32 %s9, 1
    %s15 = ssub.s32 %s9, 2
    %s22 = sadd.s32 1, %s17
    %p23 = scmp.ge.s32.totalorder %s22, 1
    %s24 = scalar_select %p23, 0, %s22
    %s25 = sadd.s32 1, %s16
    %s26 = scalar_select %p23, %s25, %s16
    %p27 = scmp.ge.s32.totalorder %s26, 2
    %s28 = scalar_select %p27, 0, %s26
    %s29 = ssub.s32 %s16, %s28
    %s30 = ssub.s32 %s17, %s24
    %s31 = sor.u32 %s29, %s30
    %p32 = scmp.eq.s32.totalorder %s31, 0
    %s34 = sadd.s32 %s33, 1
    %s35 = scalar_select %p32, %s33, %s34
    %p38 = pneg %p32
    %p39 = scmp.eq.s32.totalorder %s9, 1
    %p40 = por %p38, %p39
    %p41 = scmp.ne.s32.totalorder %s33, %s36
    %p42 = scmp.eq.s32.totalorder %s9, 0
    %p43 = por %p41, %p42
    %p44 = scmp.ne.s32.totalorder %s33, %s36
    %p45 = scmp.eq.s32.totalorder %s14, 1
    %p46 = por %p44, %p45
    %p47 = scmp.ne.s32.totalorder %s36, %s37
    %p48 = scmp.eq.s32.totalorder %s14, 0
    %p49 = por %p47, %p48
    %p50 = scmp.ne.s32.totalorder %s36, %s37
    %p51 = scmp.eq.s32.totalorder %s15, 1
    %p52 = por %p50, %p51
    %p54 = scmp.ne.s32.totalorder %s37, %s53
    %p55 = scmp.eq.s32.totalorder %s15, 0
    %p56 = por %p54, %p55
    %s57 = ssub.s32 %s17, %s24
    %p58 = scmp.eq.s32.totalorder %s57, 0
    %s60 = sadd.s32 %s59, 1
    %s61 = scalar_select %p58, %s59, %s60
    %p64 = pneg %p58
    %p65 = scmp.eq.s32.totalorder %s9, 1
    %p66 = por %p64, %p65
    %p67 = scmp.ne.s32.totalorder %s59, %s62
    %p68 = scmp.eq.s32.totalorder %s9, 0
    %p69 = por %p67, %p68
    %p70 = scmp.ne.s32.totalorder %s59, %s62
    %p71 = scmp.eq.s32.totalorder %s14, 1
    %p72 = por %p70, %p71
    %p73 = scmp.ne.s32.totalorder %s62, %s63
    %p74 = scmp.eq.s32.totalorder %s14, 0
    %p75 = por %p73, %p74
    %p76 = scmp.ne.s32.totalorder %s62, %s63
    %p77 = scmp.eq.s32.totalorder %s15, 1
    %p78 = por %p76, %p77
    %p80 = scmp.ne.s32.totalorder %s63, %s79
    %p81 = scmp.eq.s32.totalorder %s15, 0
    %p82 = por %p80, %p81
    %s84 = sadd.s32 %s83, 1
    %p87 = scmp.eq.s32.totalorder %s9, 1
    %p88 = scmp.ne.s32.totalorder %s83, %s85
    %p89 = scmp.eq.s32.totalorder %s9, 0
    %p90 = por %p88, %p89
    %p91 = scmp.ne.s32.totalorder %s83, %s85
    %p92 = scmp.eq.s32.totalorder %s14, 1
    %p93 = por %p91, %p92
    %p94 = scmp.ne.s32.totalorder %s85, %s86
    %p95 = scmp.eq.s32.totalorder %s14, 0
    %p96 = por %p94, %p95
    %p97 = scmp.ne.s32.totalorder %s85, %s86
    %p98 = scmp.eq.s32.totalorder %s15, 1
    %p99 = por %p97, %p98
    %p101 = scmp.ne.s32.totalorder %s86, %s100
    %p102 = scmp.eq.s32.totalorder %s15, 0
    %p103 = por %p101, %p102
    %s104 = ssub.s32 %s16, %s28
    %p105 = scmp.eq.s32.totalorder %s104, 0
    %s107 = sadd.s32 %s106, 1
    %s108 = scalar_select %p105, %s106, %s107
    %p111 = pneg %p105
    %p112 = scmp.eq.s32.totalorder %s9, 1
    %p113 = por %p111, %p112
    %p114 = scmp.ne.s32.totalorder %s106, %s109
    %p115 = scmp.eq.s32.totalorder %s9, 0
    %p116 = por %p114, %p115
    %p117 = scmp.ne.s32.totalorder %s106, %s109
    %p118 = scmp.eq.s32.totalorder %s14, 1
    %p119 = por %p117, %p118
    %p120 = scmp.ne.s32.totalorder %s109, %s110
    %p121 = scmp.eq.s32.totalorder %s14, 0
    %p122 = por %p120, %p121
    %p123 = scmp.ne.s32.totalorder %s109, %s110
    %p124 = scmp.eq.s32.totalorder %s15, 1
    %p125 = por %p123, %p124
    %p127 = scmp.ne.s32.totalorder %s110, %s126
    %p128 = scmp.eq.s32.totalorder %s15, 0
    %p129 = por %p127, %p128
    %p130 = scmp.le.s32.totalorder 1, %s9
    %p131 = scmp.lt.s32.totalorder %s9, 3
    %p132 = pnand %p130, %p131
    %p133 = pneg %p132
    // Predicated region
    $region9: #{_downsample_forward.1} parent=5 // pred_check
      _
    $region10: #{_downsample_forward.1} parent=5 // pred_check_branch
      %135 = sbr.rel (%p132) target = $region12
    $region11: #{_downsample_forward.1} parent=5 // pred_region
      %s136 = ssub.s32 %s9, 1
      // Predicated region
      $region13: #{_downsample_forward.1} parent=11 // pred_check
        %p137 = pneg %p75
      $region14: #{_downsample_forward.1} parent=11 // pred_check_branch
        %139 = sbr.rel (%p137) target = $region16
      $region15: #{_downsample_forward.1} parent=11 // pred_region
        %s140 = smul.u32 14, %s19
        %p141 = scmp.lt.s32.totalorder %s140, 13
        %s142 = scalar_select %p141, %s140, 13
        %s143 = smul.addr %s142, 4
        %s144 = scalar_lea.vmem %s1, %s143
        %s145 = smul.u32 14, %s19
      $region16: #{_downsample_forward.1} parent=11 // pred_fallthru
        _
      // Predicated region
      $region17: #{_downsample_forward.1} parent=11 // pred_check
        %p146 = pneg %p96
      $region18: #{_downsample_forward.1} parent=11 // pred_check_branch
        %148 = sbr.rel (%p146) target = $region20
      $region19: #{_downsample_forward.1} parent=11 // pred_region
        _
      $region20: #{_downsample_forward.1} parent=11 // pred_fallthru
        _
    $region12: #{_downsample_forward.1} parent=5 // pred_fallthru
      _
    %p149 = scmp.lt.s32.totalorder %s9, 2
    // Predicated region
    $region21: #{_downsample_forward.1} parent=5 // pred_check
      %p150 = pneg %p149
    $region22: #{_downsample_forward.1} parent=5 // pred_check_branch
      %152 = sbr.rel (%p150) target = $region24
    $region23: #{_downsample_forward.1} parent=5 // pred_region
      // Predicated region
      $region25: #{_downsample_forward.1} parent=23 // pred_check
        %p153 = pneg %p43
      $region26: #{_downsample_forward.1} parent=23 // pred_check_branch
        %155 = sbr.rel (%p153) target = $region28
      $region27: #{_downsample_forward.1} parent=23 // pred_region
        %s156 = smul.u32 64, %s16
        %p157 = scmp.lt.s32.totalorder %s156, 127
        %s158 = scalar_select %p157, %s156, 127
        %p159 = scmp.lt.s32.totalorder %s17, 0
        %s160 = scalar_select %p159, %s17, 0
        %s161 = sadd.s32 %s160, %s158
        %s162 = smul.addr %s161, 4
        %s163 = scalar_lea.vmem %s0, %s162
        %s164 = smul.u32 64, %s16
      $region28: #{_downsample_forward.1} parent=23 // pred_fallthru
        _
    $region24: #{_downsample_forward.1} parent=5 // pred_fallthru
      _
    %p165 = scmp.le.s32.totalorder 1, %s9
    %p166 = scmp.lt.s32.totalorder %s9, 3
    %p167 = pnand %p165, %p166
    %p168 = pneg %p167
    // Predicated region
    $region29: #{_downsample_forward.1} parent=5 // pred_check
      _
    $region30: #{_downsample_forward.1} parent=5 // pred_check_branch
      %170 = sbr.rel (%p167) target = $region32
    $region31: #{_downsample_forward.1} parent=5 // pred_region
      %s171 = ssub.s32 %s9, 1
      %s172 = smul.u32 64, %s18
      %p173 = scmp.lt.s32.totalorder %s172, 127
      %s174 = scalar_select %p173, %s172, 127
      %p175 = scmp.lt.s32.totalorder %s19, 0
      %s176 = scalar_select %p175, %s19, 0
      %s177 = sadd.s32 %s176, %s174
      %s178 = smul.addr %s177, 4
      %s179 = scalar_lea.vmem %s0, %s178
      %p180 = pneg %p49
      %p181 = pneg %p46
      %s182 = smul.u32 14, %s19
      %p183 = scmp.lt.s32.totalorder %s182, 13
      %s184 = scalar_select %p183, %s182, 13
      %s185 = smul.addr %s184, 4
      %s186 = scalar_lea.vmem %s1, %s185
      %p187 = pneg %p75
      %p188 = pneg %p72
      %p189 = pneg %p96
      %p190 = pneg %p93
      %p191 = pneg %p122
      %p192 = pneg %p119
      %s193 = smul.u32 64, %s18
      %p194 = scmp.lt.s32.totalorder %s193, 127
      %s195 = scalar_select %p194, %s193, 127
      %s196 = smul.addr %s195, 8
      %s197 = scalar_lea.vmem %s3, %s196
      %s198 = smul.u32 64, %s18
      %p199 = scmp.lt.s32.totalorder %s198, 127
      %s200 = scalar_select %p199, %s198, 127
      %p201 = scmp.lt.s32.totalorder %s19, 0
      %s202 = scalar_select %p201, %s19, 0
      %s203 = sadd.s32 %s202, %s200
      %s204 = smul.addr %s203, 4
      %s205 = scalar_lea.vmem %s0, %s204
      %s206 = smul.u32 64, %s18
      %s207 = smul.u32 14, %s19
      %p208 = scmp.lt.s32.totalorder %s207, 13
      %s209 = scalar_select %p208, %s207, 13
      %s210 = smul.addr %s209, 4
      %s211 = scalar_lea.vmem %s1, %s210
      %s212 = smul.u32 14, %s19
      %s213 = smul.u32 64, %s18
      %p214 = scmp.lt.s32.totalorder %s213, 127
      %s215 = scalar_select %p214, %s213, 127
      %s216 = smul.addr %s215, 8
      %s217 = scalar_lea.vmem %s3, %s216
      %s218 = smul.u32 64, %s18
      %p220 = scmp.eq.s32.totalorder %s19, 0
      // Predicated region
      $region33: #{_downsample_forward.1} parent=31 // pred_check
        %p221 = pneg %p220
      $region34: #{_downsample_forward.1} parent=31 // pred_check_branch
        %223 = sbr.rel (%p221) target = $region36
      $region35: #{_downsample_forward.1} parent=31 // pred_region
        %224 = vst [vmem:[#allocation2] sm:$0xff] 0.0
        %225 = vst [vmem:[#allocation2 + $0x8] sm:$0xff] 0.0
        %226 = vst [vmem:[#allocation2 + $0x10] sm:$0xff] 0.0
        %227 = vst [vmem:[#allocation2 + $0x18] sm:$0xff] 0.0
        %228 = vst [vmem:[#allocation2 + $0x20] sm:$0xff] 0.0
        %229 = vst [vmem:[#allocation2 + $0x28] sm:$0xff] 0.0
        %230 = vst [vmem:[#allocation2 + $0x30] sm:$0xff] 0.0
        %231 = vst [vmem:[#allocation2 + $0x38] sm:$0xff] 0.0
        %232 = vst [vmem:[#allocation2 + $0x40] sm:$0xff] 0.0
        %233 = vst [vmem:[#allocation2 + $0x48] sm:$0xff] 0.0
        %234 = vst [vmem:[#allocation2 + $0x50] sm:$0xff] 0.0
        %235 = vst [vmem:[#allocation2 + $0x58] sm:$0xff] 0.0
        %236 = vst [vmem:[#allocation2 + $0x60] sm:$0xff] 0.0
        %237 = vst [vmem:[#allocation2 + $0x68] sm:$0xff] 0.0
        %238 = vst [vmem:[#allocation2 + $0x70] sm:$0xff] 0.0
        %239 = vst [vmem:[#allocation2 + $0x78] sm:$0xff] 0.0
        %240 = vst [vmem:[#allocation2 + $0x80] sm:$0xff] 0.0
        %241 = vst [vmem:[#allocation2 + $0x88] sm:$0xff] 0.0
        %242 = vst [vmem:[#allocation2 + $0x90] sm:$0xff] 0.0
        %243 = vst [vmem:[#allocation2 + $0x98] sm:$0xff] 0.0
        %244 = vst [vmem:[#allocation2 + $0xa0] sm:$0xff] 0.0
        %245 = vst [vmem:[#allocation2 + $0xa8] sm:$0xff] 0.0
        %246 = vst [vmem:[#allocation2 + $0xb0] sm:$0xff] 0.0
        %247 = vst [vmem:[#allocation2 + $0xb8] sm:$0xff] 0.0
        %248 = vst [vmem:[#allocation2 + $0xc0] sm:$0xff] 0.0
        %249 = vst [vmem:[#allocation2 + $0xc8] sm:$0xff] 0.0
        %250 = vst [vmem:[#allocation2 + $0xd0] sm:$0xff] 0.0
        %251 = vst [vmem:[#allocation2 + $0xd8] sm:$0xff] 0.0
        %252 = vst [vmem:[#allocation2 + $0xe0] sm:$0xff] 0.0
        %253 = vst [vmem:[#allocation2 + $0xe8] sm:$0xff] 0.0
        %254 = vst [vmem:[#allocation2 + $0xf0] sm:$0xff] 0.0
        %255 = vst [vmem:[#allocation2 + $0xf8] sm:$0xff] 0.0
        %256 = vst [vmem:[#allocation2 + $0x100] sm:$0xff] 0.0
        %257 = vst [vmem:[#allocation2 + $0x108] sm:$0xff] 0.0
        %258 = vst [vmem:[#allocation2 + $0x110] sm:$0xff] 0.0
        %259 = vst [vmem:[#allocation2 + $0x118] sm:$0xff] 0.0
        %260 = vst [vmem:[#allocation2 + $0x120] sm:$0xff] 0.0
        %261 = vst [vmem:[#allocation2 + $0x128] sm:$0xff] 0.0
        %262 = vst [vmem:[#allocation2 + $0x130] sm:$0xff] 0.0
        %263 = vst [vmem:[#allocation2 + $0x138] sm:$0xff] 0.0
        %264 = vst [vmem:[#allocation2 + $0x140] sm:$0xff] 0.0
        %265 = vst [vmem:[#allocation2 + $0x148] sm:$0xff] 0.0
        %266 = vst [vmem:[#allocation2 + $0x150] sm:$0xff] 0.0
        %267 = vst [vmem:[#allocation2 + $0x158] sm:$0xff] 0.0
        %268 = vst [vmem:[#allocation2 + $0x160] sm:$0xff] 0.0
        %269 = vst [vmem:[#allocation2 + $0x168] sm:$0xff] 0.0
        %270 = vst [vmem:[#allocation2 + $0x170] sm:$0xff] 0.0
        %271 = vst [vmem:[#allocation2 + $0x178] sm:$0xff] 0.0
        %272 = vst [vmem:[#allocation2 + $0x180] sm:$0xff] 0.0
        %273 = vst [vmem:[#allocation2 + $0x188] sm:$0xff] 0.0
        %274 = vst [vmem:[#allocation2 + $0x190] sm:$0xff] 0.0
        %275 = vst [vmem:[#allocation2 + $0x198] sm:$0xff] 0.0
        %276 = vst [vmem:[#allocation2 + $0x1a0] sm:$0xff] 0.0
        %277 = vst [vmem:[#allocation2 + $0x1a8] sm:$0xff] 0.0
        %278 = vst [vmem:[#allocation2 + $0x1b0] sm:$0xff] 0.0
        %279 = vst [vmem:[#allocation2 + $0x1b8] sm:$0xff] 0.0
        %280 = vst [vmem:[#allocation2 + $0x1c0] sm:$0xff] 0.0
        %281 = vst [vmem:[#allocation2 + $0x1c8] sm:$0xff] 0.0
        %282 = vst [vmem:[#allocation2 + $0x1d0] sm:$0xff] 0.0
        %283 = vst [vmem:[#allocation2 + $0x1d8] sm:$0xff] 0.0
        %284 = vst [vmem:[#allocation2 + $0x1e0] sm:$0xff] 0.0
        %285 = vst [vmem:[#allocation2 + $0x1e8] sm:$0xff] 0.0
        %286 = vst [vmem:[#allocation2 + $0x1f0] sm:$0xff] 0.0
        %287 = vst [vmem:[#allocation2 + $0x1f8] sm:$0xff] 0.0
      $region36: #{_downsample_forward.1} parent=31 // pred_fallthru
        _
      %v288 = vld [vmem:[#allocation2] sm:$0xff]
      %v289 = vld [vmem:[#allocation2 + $0x8] sm:$0xff]
      %v290 = vld [vmem:[#allocation2 + $0x10] sm:$0xff]
      %v291 = vld [vmem:[#allocation2 + $0x18] sm:$0xff]
      %v292 = vld [vmem:[#allocation2 + $0x20] sm:$0xff]
      %v293 = vld [vmem:[#allocation2 + $0x28] sm:$0xff]
      %v294 = vld [vmem:[#allocation2 + $0x30] sm:$0xff]
      %v295 = vld [vmem:[#allocation2 + $0x38] sm:$0xff]
      %v296 = vld [vmem:[#allocation2 + $0x40] sm:$0xff]
      %v297 = vld [vmem:[#allocation2 + $0x48] sm:$0xff]
      %v298 = vld [vmem:[#allocation2 + $0x50] sm:$0xff]
      %v299 = vld [vmem:[#allocation2 + $0x58] sm:$0xff]
      %v300 = vld [vmem:[#allocation2 + $0x60] sm:$0xff]
      %v301 = vld [vmem:[#allocation2 + $0x68] sm:$0xff]
      %v302 = vld [vmem:[#allocation2 + $0x70] sm:$0xff]
      %v303 = vld [vmem:[#allocation2 + $0x78] sm:$0xff]
      %v304 = vld [vmem:[#allocation2 + $0x80] sm:$0xff]
      %v305 = vld [vmem:[#allocation2 + $0x88] sm:$0xff]
      %v306 = vld [vmem:[#allocation2 + $0x90] sm:$0xff]
      %v307 = vld [vmem:[#allocation2 + $0x98] sm:$0xff]
      %v308 = vld [vmem:[#allocation2 + $0xa0] sm:$0xff]
      %v309 = vld [vmem:[#allocation2 + $0xa8] sm:$0xff]
      %v310 = vld [vmem:[#allocation2 + $0xb0] sm:$0xff]
      %v311 = vld [vmem:[#allocation2 + $0xb8] sm:$0xff]
      %v312 = vld [vmem:[#allocation2 + $0xc0] sm:$0xff]
      %v313 = vld [vmem:[#allocation2 + $0xc8] sm:$0xff]
      %v314 = vld [vmem:[#allocation2 + $0xd0] sm:$0xff]
      %v315 = vld [vmem:[#allocation2 + $0xd8] sm:$0xff]
      %v316 = vld [vmem:[#allocation2 + $0xe0] sm:$0xff]
      %v317 = vld [vmem:[#allocation2 + $0xe8] sm:$0xff]
      %v318 = vld [vmem:[#allocation2 + $0xf0] sm:$0xff]
      %v319 = vld [vmem:[#allocation2 + $0xf8] sm:$0xff]
      %v320 = vld [vmem:[#allocation2 + $0x100] sm:$0xff]
      %v321 = vld [vmem:[#allocation2 + $0x108] sm:$0xff]
      %v322 = vld [vmem:[#allocation2 + $0x110] sm:$0xff]
      %v323 = vld [vmem:[#allocation2 + $0x118] sm:$0xff]
      %v324 = vld [vmem:[#allocation2 + $0x120] sm:$0xff]
      %v325 = vld [vmem:[#allocation2 + $0x128] sm:$0xff]
      %v326 = vld [vmem:[#allocation2 + $0x130] sm:$0xff]
      %v327 = vld [vmem:[#allocation2 + $0x138] sm:$0xff]
      %v328 = vld [vmem:[#allocation2 + $0x140] sm:$0xff]
      %v329 = vld [vmem:[#allocation2 + $0x148] sm:$0xff]
      %v330 = vld [vmem:[#allocation2 + $0x150] sm:$0xff]
      %v331 = vld [vmem:[#allocation2 + $0x158] sm:$0xff]
      %v332 = vld [vmem:[#allocation2 + $0x160] sm:$0xff]
      %v333 = vld [vmem:[#allocation2 + $0x168] sm:$0xff]
      %v334 = vld [vmem:[#allocation2 + $0x170] sm:$0xff]
      %v335 = vld [vmem:[#allocation2 + $0x178] sm:$0xff]
      %v336 = vld [vmem:[#allocation2 + $0x180] sm:$0xff]
      %v337 = vld [vmem:[#allocation2 + $0x188] sm:$0xff]
      %v338 = vld [vmem:[#allocation2 + $0x190] sm:$0xff]
      %v339 = vld [vmem:[#allocation2 + $0x198] sm:$0xff]
      %v340 = vld [vmem:[#allocation2 + $0x1a0] sm:$0xff]
      %v341 = vld [vmem:[#allocation2 + $0x1a8] sm:$0xff]
      %v342 = vld [vmem:[#allocation2 + $0x1b0] sm:$0xff]
      %v343 = vld [vmem:[#allocation2 + $0x1b8] sm:$0xff]
      %v344 = vld [vmem:[#allocation2 + $0x1c0] sm:$0xff]
      %v345 = vld [vmem:[#allocation2 + $0x1c8] sm:$0xff]
      %v346 = vld [vmem:[#allocation2 + $0x1d0] sm:$0xff]
      %v347 = vld [vmem:[#allocation2 + $0x1d8] sm:$0xff]
      %v348 = vld [vmem:[#allocation2 + $0x1e0] sm:$0xff]
      %v349 = vld [vmem:[#allocation2 + $0x1e8] sm:$0xff]
      %v350 = vld [vmem:[#allocation2 + $0x1f0] sm:$0xff]
      %v351 = vld [vmem:[#allocation2 + $0x1f8] sm:$0xff]
      %v352 = vld [vmem:[%s205] sm:$0xf]
      %v353 = vld [vmem:[%s205 + $0x4] sm:$0xf]
      %v354 = vld [vmem:[%s205 + $0x8] sm:$0xf]
      %v355 = vld [vmem:[%s205 + $0xc] sm:$0xf]
      %v356 = vld [vmem:[%s205 + $0x10] sm:$0xf]
      %v357 = vld [vmem:[%s205 + $0x14] sm:$0xf]
      %v358 = vld [vmem:[%s205 + $0x18] sm:$0xf]
      %v359 = vld [vmem:[%s205 + $0x1c] sm:$0xf]
      %v360 = vld [vmem:[%s205 + $0x20] sm:$0xf]
      %v361 = vld [vmem:[%s205 + $0x24] sm:$0xf]
      %v362 = vld [vmem:[%s205 + $0x28] sm:$0xf]
      %v363 = vld [vmem:[%s205 + $0x2c] sm:$0xf]
      %v364 = vld [vmem:[%s205 + $0x30] sm:$0xf]
      %v365 = vld [vmem:[%s205 + $0x34] sm:$0xf]
      %v366 = vld [vmem:[%s205 + $0x38] sm:$0xf]
      %v367 = vld [vmem:[%s205 + $0x3c] sm:$0xf]
      %v368 = vld [vmem:[%s205 + $0x40] sm:$0xf]
      %v369 = vld [vmem:[%s205 + $0x44] sm:$0xf]
      %v370 = vld [vmem:[%s205 + $0x48] sm:$0xf]
      %v371 = vld [vmem:[%s205 + $0x4c] sm:$0xf]
      %v372 = vld [vmem:[%s205 + $0x50] sm:$0xf]
      %v373 = vld [vmem:[%s205 + $0x54] sm:$0xf]
      %v374 = vld [vmem:[%s205 + $0x58] sm:$0xf]
      %v375 = vld [vmem:[%s205 + $0x5c] sm:$0xf]
      %v376 = vld [vmem:[%s205 + $0x60] sm:$0xf]
      %v377 = vld [vmem:[%s205 + $0x64] sm:$0xf]
      %v378 = vld [vmem:[%s205 + $0x68] sm:$0xf]
      %v379 = vld [vmem:[%s205 + $0x6c] sm:$0xf]
      %v380 = vld [vmem:[%s205 + $0x70] sm:$0xf]
      %v381 = vld [vmem:[%s205 + $0x74] sm:$0xf]
      %v382 = vld [vmem:[%s205 + $0x78] sm:$0xf]
      %v383 = vld [vmem:[%s205 + $0x7c] sm:$0xf]
      %v384 = vld [vmem:[%s205 + $0x80] sm:$0xf]
      %v385 = vld [vmem:[%s205 + $0x84] sm:$0xf]
      %v386 = vld [vmem:[%s205 + $0x88] sm:$0xf]
      %v387 = vld [vmem:[%s205 + $0x8c] sm:$0xf]
      %v388 = vld [vmem:[%s205 + $0x90] sm:$0xf]
      %v389 = vld [vmem:[%s205 + $0x94] sm:$0xf]
      %v390 = vld [vmem:[%s205 + $0x98] sm:$0xf]
      %v391 = vld [vmem:[%s205 + $0x9c] sm:$0xf]
      %v392 = vld [vmem:[%s205 + $0xa0] sm:$0xf]
      %v393 = vld [vmem:[%s205 + $0xa4] sm:$0xf]
      %v394 = vld [vmem:[%s205 + $0xa8] sm:$0xf]
      %v395 = vld [vmem:[%s205 + $0xac] sm:$0xf]
      %v396 = vld [vmem:[%s205 + $0xb0] sm:$0xf]
      %v397 = vld [vmem:[%s205 + $0xb4] sm:$0xf]
      %v398 = vld [vmem:[%s205 + $0xb8] sm:$0xf]
      %v399 = vld [vmem:[%s205 + $0xbc] sm:$0xf]
      %v400 = vld [vmem:[%s205 + $0xc0] sm:$0xf]
      %v401 = vld [vmem:[%s205 + $0xc4] sm:$0xf]
      %v402 = vld [vmem:[%s205 + $0xc8] sm:$0xf]
      %v403 = vld [vmem:[%s205 + $0xcc] sm:$0xf]
      %v404 = vld [vmem:[%s205 + $0xd0] sm:$0xf]
      %v405 = vld [vmem:[%s205 + $0xd4] sm:$0xf]
      %v406 = vld [vmem:[%s205 + $0xd8] sm:$0xf]
      %v407 = vld [vmem:[%s205 + $0xdc] sm:$0xf]
      %v408 = vld [vmem:[%s205 + $0xe0] sm:$0xf]
      %v409 = vld [vmem:[%s205 + $0xe4] sm:$0xf]
      %v410 = vld [vmem:[%s205 + $0xe8] sm:$0xf]
      %v411 = vld [vmem:[%s205 + $0xec] sm:$0xf]
      %v412 = vld [vmem:[%s205 + $0xf0] sm:$0xf]
      %v413 = vld [vmem:[%s205 + $0xf4] sm:$0xf]
      %v414 = vld [vmem:[%s205 + $0xf8] sm:$0xf]
      %v415 = vld [vmem:[%s205 + $0xfc] sm:$0xf]
      %v416 = vld [vmem:[%s211] sm:$0xf]
      %v417 = vld [vmem:[%s211 + $0x4] sm:$0xf]
      %v418 = vld [vmem:[%s211 + $0x8] sm:$0xf]
      %v419 = vld [vmem:[%s211 + $0xc] sm:$0xf]
      %v420 = vld [vmem:[%s211 + $0x10] sm:$0xf]
      %v421 = vld [vmem:[%s211 + $0x14] sm:$0xf]
      %v422 = vld [vmem:[%s211 + $0x18] sm:$0xf]
      %v423 = vld [vmem:[%s211 + $0x1c] sm:$0xf]
      %v424 = vld [vmem:[%s211 + $0x20] sm:$0xf]
      %v425 = vld [vmem:[%s211 + $0x24] sm:$0xf]
      %v426 = vld [vmem:[%s211 + $0x28] sm:$0xf]
      %v427 = vld [vmem:[%s211 + $0x2c] sm:$0xf]
      %v428 = vld [vmem:[%s211 + $0x30] sm:$0xf]
      %v429 = vld [vmem:[%s211 + $0x34] sm:$0x3]
      %v494 = vunpack.c.l.b16 %v352
      %v495 = vunpack.c.l.b16 %v353
      %v496 = vunpack.c.l.b16 %v354
      %v497 = vunpack.c.l.b16 %v355
      %v498 = vunpack.c.l.b16 %v356
      %v499 = vunpack.c.l.b16 %v357
      %v500 = vunpack.c.l.b16 %v358
      %v501 = vunpack.c.l.b16 %v359
      %v502 = vunpack.c.l.b16 %v360
      %v503 = vunpack.c.l.b16 %v361
      %v504 = vunpack.c.l.b16 %v362
      %v505 = vunpack.c.l.b16 %v363
      %v506 = vunpack.c.l.b16 %v364
      %v507 = vunpack.c.l.b16 %v365
      %v508 = vunpack.c.l.b16 %v366
      %v509 = vunpack.c.l.b16 %v367
      %v510 = vunpack.c.l.b16 %v368
      %v511 = vunpack.c.l.b16 %v369
      %v512 = vunpack.c.l.b16 %v370
      %v513 = vunpack.c.l.b16 %v371
      %v514 = vunpack.c.l.b16 %v372
      %v515 = vunpack.c.l.b16 %v373
      %v516 = vunpack.c.l.b16 %v374
      %v517 = vunpack.c.l.b16 %v375
      %v518 = vunpack.c.l.b16 %v376
      %v519 = vunpack.c.l.b16 %v377
      %v520 = vunpack.c.l.b16 %v378
      %v521 = vunpack.c.l.b16 %v379
      %v522 = vunpack.c.l.b16 %v380
      %v523 = vunpack.c.l.b16 %v381
      %v524 = vunpack.c.l.b16 %v382
      %v525 = vunpack.c.l.b16 %v383
      %v526 = vunpack.c.l.b16 %v384
      %v527 = vunpack.c.l.b16 %v385
      %v528 = vunpack.c.l.b16 %v386
      %v529 = vunpack.c.l.b16 %v387
      %v530 = vunpack.c.l.b16 %v388
      %v531 = vunpack.c.l.b16 %v389
      %v532 = vunpack.c.l.b16 %v390
      %v533 = vunpack.c.l.b16 %v391
      %v534 = vunpack.c.l.b16 %v392
      %v535 = vunpack.c.l.b16 %v393
      %v536 = vunpack.c.l.b16 %v394
      %v537 = vunpack.c.l.b16 %v395
      %v538 = vunpack.c.l.b16 %v396
      %v539 = vunpack.c.l.b16 %v397
      %v540 = vunpack.c.l.b16 %v398
      %v541 = vunpack.c.l.b16 %v399
      %v542 = vunpack.c.l.b16 %v400
      %v543 = vunpack.c.l.b16 %v401
      %v544 = vunpack.c.l.b16 %v402
      %v545 = vunpack.c.l.b16 %v403
      %v546 = vunpack.c.l.b16 %v404
      %v547 = vunpack.c.l.b16 %v405
      %v548 = vunpack.c.l.b16 %v406
      %v549 = vunpack.c.l.b16 %v407
      %v550 = vunpack.c.l.b16 %v408
      %v551 = vunpack.c.l.b16 %v409
      %v552 = vunpack.c.l.b16 %v410
      %v553 = vunpack.c.l.b16 %v411
      %v554 = vunpack.c.l.b16 %v412
      %v555 = vunpack.c.l.b16 %v413
      %v556 = vunpack.c.l.b16 %v414
      %v557 = vunpack.c.l.b16 %v415
      %v558 = vpack.c.b16 %v495, %v494
      %v559 = vpack.c.b16 %v497, %v496
      %v560 = vpack.c.b16 %v499, %v498
      %v561 = vpack.c.b16 %v501, %v500
      %v562 = vpack.c.b16 %v503, %v502
      %v563 = vpack.c.b16 %v505, %v504
      %v564 = vpack.c.b16 %v507, %v506
      %v565 = vpack.c.b16 %v509, %v508
      %v566 = vpack.c.b16 %v511, %v510
      %v567 = vpack.c.b16 %v513, %v512
      %v568 = vpack.c.b16 %v515, %v514
      %v569 = vpack.c.b16 %v517, %v516
      %v570 = vpack.c.b16 %v519, %v518
      %v571 = vpack.c.b16 %v521, %v520
      %v572 = vpack.c.b16 %v523, %v522
      %v573 = vpack.c.b16 %v525, %v524
      %v574 = vpack.c.b16 %v527, %v526
      %v575 = vpack.c.b16 %v529, %v528
      %v576 = vpack.c.b16 %v531, %v530
      %v577 = vpack.c.b16 %v533, %v532
      %v578 = vpack.c.b16 %v535, %v534
      %v579 = vpack.c.b16 %v537, %v536
      %v580 = vpack.c.b16 %v539, %v538
      %v581 = vpack.c.b16 %v541, %v540
      %v582 = vpack.c.b16 %v543, %v542
      %v583 = vpack.c.b16 %v545, %v544
      %v584 = vpack.c.b16 %v547, %v546
      %v585 = vpack.c.b16 %v549, %v548
      %v586 = vpack.c.b16 %v551, %v550
      %v587 = vpack.c.b16 %v553, %v552
      %v588 = vpack.c.b16 %v555, %v554
      %v589 = vpack.c.b16 %v557, %v556
      %v604 = vunpack.c.l.b16 %v416
      %v605 = vunpack.c.l.b16 %v417
      %v606 = vunpack.c.l.b16 %v418
      %v607 = vunpack.c.l.b16 %v419
      %v608 = vunpack.c.l.b16 %v420
      %v609 = vunpack.c.l.b16 %v421
      %v610 = vunpack.c.l.b16 %v422
      %v611 = vunpack.c.l.b16 %v423
      %v612 = vunpack.c.l.b16 %v424
      %v613 = vunpack.c.l.b16 %v425
      %v614 = vunpack.c.l.b16 %v426
      %v615 = vunpack.c.l.b16 %v427
      %v616 = vunpack.c.l.b16 %v428
      %v617 = vunpack.c.l.b16 %v429
      %v618 = vpack.c.b16 %v605, %v604
      %v619 = vpack.c.b16 %v607, %v606
      %v620 = vpack.c.b16 %v609, %v608
      %v621 = vpack.c.b16 %v611, %v610
      %v622 = vpack.c.b16 %v613, %v612
      %v623 = vpack.c.b16 %v615, %v614
      %v624 = vpack.c.b16 %v617, %v616
      %vm631 = vcmask 883712
      %v633 = vsel %vm631, %v558, 0
      %v636 = vsel %vm631, %v559, 0
      %v639 = vsel %vm631, %v560, 0
      %v642 = vsel %vm631, %v561, 0
      %v645 = vsel %vm631, %v562, 0
      %v648 = vsel %vm631, %v563, 0
      %v651 = vsel %vm631, %v564, 0
      %v654 = vsel %vm631, %v565, 0
      %v657 = vsel %vm631, %v566, 0
      %v660 = vsel %vm631, %v567, 0
      %v663 = vsel %vm631, %v568, 0
      %v666 = vsel %vm631, %v569, 0
      %v669 = vsel %vm631, %v570, 0
      %v672 = vsel %vm631, %v571, 0
      %v675 = vsel %vm631, %v572, 0
      %v678 = vsel %vm631, %v573, 0
      %v681 = vsel %vm631, %v574, 0
      %v684 = vsel %vm631, %v575, 0
      %v687 = vsel %vm631, %v576, 0
      %v690 = vsel %vm631, %v577, 0
      %v693 = vsel %vm631, %v578, 0
      %v696 = vsel %vm631, %v579, 0
      %v699 = vsel %vm631, %v580, 0
      %v702 = vsel %vm631, %v581, 0
      %v705 = vsel %vm631, %v582, 0
      %v708 = vsel %vm631, %v583, 0
      %v711 = vsel %vm631, %v584, 0
      %v714 = vsel %vm631, %v585, 0
      %v717 = vsel %vm631, %v586, 0
      %v720 = vsel %vm631, %v587, 0
      %v723 = vsel %vm631, %v588, 0
      %v726 = vsel %vm631, %v589, 0
      %vm728 = vcmask 1045504
      %v730 = vsel %vm728, %v624, 0
      %732 = vmatpush.bf16.msra.mxu0 0
      %733 = vmatpush.bf16.msra.mxu0 %v730
      %734 = vmatpush.bf16.msra.mxu0 %v623
      %735 = vmatpush.bf16.msra.mxu0 %v622
      %736 = vmatpush.bf16.msra.mxu0 %v621
      %737 = vmatpush.bf16.msra.mxu0 %v620
      %738 = vmatpush.bf16.msra.mxu0 %v619
      %739 = vmatpush.bf16.msra.mxu0 %v618
      %740 = vmatmul.bf16.gmra.mxu0 %v633
      %v741 = vpop.f32.mrf.mxu0
      %v742 = vadd.f32 0.0, %v741
      %v743 = vpop.f32.mrf.mxu0
      %v744 = vadd.f32 0.0, %v743
      %745 = vmatmul.bf16.gmra.mxu0 %v636
      %v746 = vpop.f32.mrf.mxu0
      %v747 = vadd.f32 0.0, %v746
      %v748 = vpop.f32.mrf.mxu0
      %v749 = vadd.f32 0.0, %v748
      %750 = vmatmul.bf16.gmra.mxu0 %v639
      %v751 = vpop.f32.mrf.mxu0
      %v752 = vadd.f32 0.0, %v751
      %v753 = vpop.f32.mrf.mxu0
      %v754 = vadd.f32 0.0, %v753
      %755 = vmatmul.bf16.gmra.mxu0 %v642
      %v756 = vpop.f32.mrf.mxu0
      %v757 = vadd.f32 0.0, %v756
      %v758 = vpop.f32.mrf.mxu0
      %v759 = vadd.f32 0.0, %v758
      %760 = vmatmul.bf16.gmra.mxu0 %v645
      %v761 = vpop.f32.mrf.mxu0
      %v762 = vadd.f32 0.0, %v761
      %v763 = vpop.f32.mrf.mxu0
      %v764 = vadd.f32 0.0, %v763
      %765 = vmatmul.bf16.gmra.mxu0 %v648
      %v766 = vpop.f32.mrf.mxu0
      %v767 = vadd.f32 0.0, %v766
      %v768 = vpop.f32.mrf.mxu0
      %v769 = vadd.f32 0.0, %v768
      %770 = vmatmul.bf16.gmra.mxu0 %v651
      %v771 = vpop.f32.mrf.mxu0
      %v772 = vadd.f32 0.0, %v771
      %v773 = vpop.f32.mrf.mxu0
      %v774 = vadd.f32 0.0, %v773
      %775 = vmatmul.bf16.gmra.mxu0 %v654
      %v776 = vpop.f32.mrf.mxu0
      %v777 = vadd.f32 0.0, %v776
      %v778 = vpop.f32.mrf.mxu0
      %v779 = vadd.f32 0.0, %v778
      %780 = vmatmul.bf16.gmra.mxu0 %v657
      %v781 = vpop.f32.mrf.mxu0
      %v782 = vadd.f32 0.0, %v781
      %v783 = vpop.f32.mrf.mxu0
      %v784 = vadd.f32 0.0, %v783
      %785 = vmatmul.bf16.gmra.mxu0 %v660
      %v786 = vpop.f32.mrf.mxu0
      %v787 = vadd.f32 0.0, %v786
      %v788 = vpop.f32.mrf.mxu0
      %v789 = vadd.f32 0.0, %v788
      %790 = vmatmul.bf16.gmra.mxu0 %v663
      %v791 = vpop.f32.mrf.mxu0
      %v792 = vadd.f32 0.0, %v791
      %v793 = vpop.f32.mrf.mxu0
      %v794 = vadd.f32 0.0, %v793
      %795 = vmatmul.bf16.gmra.mxu0 %v666
      %v796 = vpop.f32.mrf.mxu0
      %v797 = vadd.f32 0.0, %v796
      %v798 = vpop.f32.mrf.mxu0
      %v799 = vadd.f32 0.0, %v798
      %800 = vmatmul.bf16.gmra.mxu0 %v669
      %v801 = vpop.f32.mrf.mxu0
      %v802 = vadd.f32 0.0, %v801
      %v803 = vpop.f32.mrf.mxu0
      %v804 = vadd.f32 0.0, %v803
      %805 = vmatmul.bf16.gmra.mxu0 %v672
      %v806 = vpop.f32.mrf.mxu0
      %v807 = vadd.f32 0.0, %v806
      %v808 = vpop.f32.mrf.mxu0
      %v809 = vadd.f32 0.0, %v808
      %810 = vmatmul.bf16.gmra.mxu0 %v675
      %v811 = vpop.f32.mrf.mxu0
      %v812 = vadd.f32 0.0, %v811
      %v813 = vpop.f32.mrf.mxu0
      %v814 = vadd.f32 0.0, %v813
      %815 = vmatmul.bf16.gmra.mxu0 %v678
      %v816 = vpop.f32.mrf.mxu0
      %v817 = vadd.f32 0.0, %v816
      %v818 = vpop.f32.mrf.mxu0
      %v819 = vadd.f32 0.0, %v818
      %820 = vmatmul.bf16.gmra.mxu0 %v681
      %v821 = vpop.f32.mrf.mxu0
      %v822 = vadd.f32 0.0, %v821
      %v823 = vpop.f32.mrf.mxu0
      %v824 = vadd.f32 0.0, %v823
      %825 = vmatmul.bf16.gmra.mxu0 %v684
      %v826 = vpop.f32.mrf.mxu0
      %v827 = vadd.f32 0.0, %v826
      %v828 = vpop.f32.mrf.mxu0
      %v829 = vadd.f32 0.0, %v828
      %830 = vmatmul.bf16.gmra.mxu0 %v687
      %v831 = vpop.f32.mrf.mxu0
      %v832 = vadd.f32 0.0, %v831
      %v833 = vpop.f32.mrf.mxu0
      %v834 = vadd.f32 0.0, %v833
      %835 = vmatmul.bf16.gmra.mxu0 %v690
      %v836 = vpop.f32.mrf.mxu0
      %v837 = vadd.f32 0.0, %v836
      %v838 = vpop.f32.mrf.mxu0
      %v839 = vadd.f32 0.0, %v838
      %840 = vmatmul.bf16.gmra.mxu0 %v693
      %v841 = vpop.f32.mrf.mxu0
      %v842 = vadd.f32 0.0, %v841
      %v843 = vpop.f32.mrf.mxu0
      %v844 = vadd.f32 0.0, %v843
      %845 = vmatmul.bf16.gmra.mxu0 %v696
      %v846 = vpop.f32.mrf.mxu0
      %v847 = vadd.f32 0.0, %v846
      %v848 = vpop.f32.mrf.mxu0
      %v849 = vadd.f32 0.0, %v848
      %850 = vmatmul.bf16.gmra.mxu0 %v699
      %v851 = vpop.f32.mrf.mxu0
      %v852 = vadd.f32 0.0, %v851
      %v853 = vpop.f32.mrf.mxu0
      %v854 = vadd.f32 0.0, %v853
      %855 = vmatmul.bf16.gmra.mxu0 %v702
      %v856 = vpop.f32.mrf.mxu0
      %v857 = vadd.f32 0.0, %v856
      %v858 = vpop.f32.mrf.mxu0
      %v859 = vadd.f32 0.0, %v858
      %860 = vmatmul.bf16.gmra.mxu0 %v705
      %v861 = vpop.f32.mrf.mxu0
      %v862 = vadd.f32 0.0, %v861
      %v863 = vpop.f32.mrf.mxu0
      %v864 = vadd.f32 0.0, %v863
      %865 = vmatmul.bf16.gmra.mxu0 %v708
      %v866 = vpop.f32.mrf.mxu0
      %v867 = vadd.f32 0.0, %v866
      %v868 = vpop.f32.mrf.mxu0
      %v869 = vadd.f32 0.0, %v868
      %870 = vmatmul.bf16.gmra.mxu0 %v711
      %v871 = vpop.f32.mrf.mxu0
      %v872 = vadd.f32 0.0, %v871
      %v873 = vpop.f32.mrf.mxu0
      %v874 = vadd.f32 0.0, %v873
      %875 = vmatmul.bf16.gmra.mxu0 %v714
      %v876 = vpop.f32.mrf.mxu0
      %v877 = vadd.f32 0.0, %v876
      %v878 = vpop.f32.mrf.mxu0
      %v879 = vadd.f32 0.0, %v878
      %880 = vmatmul.bf16.gmra.mxu0 %v717
      %v881 = vpop.f32.mrf.mxu0
      %v882 = vadd.f32 0.0, %v881
      %v883 = vpop.f32.mrf.mxu0
      %v884 = vadd.f32 0.0, %v883
      %885 = vmatmul.bf16.gmra.mxu0 %v720
      %v886 = vpop.f32.mrf.mxu0
      %v887 = vadd.f32 0.0, %v886
      %v888 = vpop.f32.mrf.mxu0
      %v889 = vadd.f32 0.0, %v888
      %890 = vmatmul.bf16.gmra.mxu0 %v723
      %v891 = vpop.f32.mrf.mxu0
      %v892 = vadd.f32 0.0, %v891
      %v893 = vpop.f32.mrf.mxu0
      %v894 = vadd.f32 0.0, %v893
      %895 = vmatmul.bf16.gmra.mxu0 %v726
      %v896 = vpop.f32.mrf.mxu0
      %v897 = vadd.f32 0.0, %v896
      %v898 = vpop.f32.mrf.mxu0
      %v899 = vadd.f32 0.0, %v898
      %900 = vdwg.mxu0
      %v901 = vadd.f32 %v288, %v742
      %v902 = vadd.f32 %v289, %v744
      %v903 = vadd.f32 %v290, %v747
      %v904 = vadd.f32 %v291, %v749
      %v905 = vadd.f32 %v292, %v752
      %v906 = vadd.f32 %v293, %v754
      %v907 = vadd.f32 %v294, %v757
      %v908 = vadd.f32 %v295, %v759
      %v909 = vadd.f32 %v296, %v762
      %v910 = vadd.f32 %v297, %v764
      %v911 = vadd.f32 %v298, %v767
      %v912 = vadd.f32 %v299, %v769
      %v913 = vadd.f32 %v300, %v772
      %v914 = vadd.f32 %v301, %v774
      %v915 = vadd.f32 %v302, %v777
      %v916 = vadd.f32 %v303, %v779
      %v917 = vadd.f32 %v304, %v782
      %v918 = vadd.f32 %v305, %v784
      %v919 = vadd.f32 %v306, %v787
      %v920 = vadd.f32 %v307, %v789
      %v921 = vadd.f32 %v308, %v792
      %v922 = vadd.f32 %v309, %v794
      %v923 = vadd.f32 %v310, %v797
      %v924 = vadd.f32 %v311, %v799
      %v925 = vadd.f32 %v312, %v802
      %v926 = vadd.f32 %v313, %v804
      %v927 = vadd.f32 %v314, %v807
      %v928 = vadd.f32 %v315, %v809
      %v929 = vadd.f32 %v316, %v812
      %v930 = vadd.f32 %v317, %v814
      %v931 = vadd.f32 %v318, %v817
      %v932 = vadd.f32 %v319, %v819
      %v933 = vadd.f32 %v320, %v822
      %v934 = vadd.f32 %v321, %v824
      %v935 = vadd.f32 %v322, %v827
      %v936 = vadd.f32 %v323, %v829
      %v937 = vadd.f32 %v324, %v832
      %v938 = vadd.f32 %v325, %v834
      %v939 = vadd.f32 %v326, %v837
      %v940 = vadd.f32 %v327, %v839
      %v941 = vadd.f32 %v328, %v842
      %v942 = vadd.f32 %v329, %v844
      %v943 = vadd.f32 %v330, %v847
      %v944 = vadd.f32 %v331, %v849
      %v945 = vadd.f32 %v332, %v852
      %v946 = vadd.f32 %v333, %v854
      %v947 = vadd.f32 %v334, %v857
      %v948 = vadd.f32 %v335, %v859
      %v949 = vadd.f32 %v336, %v862
      %v950 = vadd.f32 %v337, %v864
      %v951 = vadd.f32 %v338, %v867
      %v952 = vadd.f32 %v339, %v869
      %v953 = vadd.f32 %v340, %v872
      %v954 = vadd.f32 %v341, %v874
      %v955 = vadd.f32 %v342, %v877
      %v956 = vadd.f32 %v343, %v879
      %v957 = vadd.f32 %v344, %v882
      %v958 = vadd.f32 %v345, %v884
      %v959 = vadd.f32 %v346, %v887
      %v960 = vadd.f32 %v347, %v889
      %v961 = vadd.f32 %v348, %v892
      %v962 = vadd.f32 %v349, %v894
      %v963 = vadd.f32 %v350, %v897
      %v964 = vadd.f32 %v351, %v899
      %965 = vst [vmem:[#allocation2] sm:$0xff] %v901
      %966 = vst [vmem:[#allocation2 + $0x8] sm:$0xff] %v902
      %967 = vst [vmem:[#allocation2 + $0x10] sm:$0xff] %v903
      %968 = vst [vmem:[#allocation2 + $0x18] sm:$0xff] %v904
      %969 = vst [vmem:[#allocation2 + $0x20] sm:$0xff] %v905
      %970 = vst [vmem:[#allocation2 + $0x28] sm:$0xff] %v906
      %971 = vst [vmem:[#allocation2 + $0x30] sm:$0xff] %v907
      %972 = vst [vmem:[#allocation2 + $0x38] sm:$0xff] %v908
      %973 = vst [vmem:[#allocation2 + $0x40] sm:$0xff] %v909
      %974 = vst [vmem:[#allocation2 + $0x48] sm:$0xff] %v910
      %975 = vst [vmem:[#allocation2 + $0x50] sm:$0xff] %v911
      %976 = vst [vmem:[#allocation2 + $0x58] sm:$0xff] %v912
      %977 = vst [vmem:[#allocation2 + $0x60] sm:$0xff] %v913
      %978 = vst [vmem:[#allocation2 + $0x68] sm:$0xff] %v914
      %979 = vst [vmem:[#allocation2 + $0x70] sm:$0xff] %v915
      %980 = vst [vmem:[#allocation2 + $0x78] sm:$0xff] %v916
      %981 = vst [vmem:[#allocation2 + $0x80] sm:$0xff] %v917
      %982 = vst [vmem:[#allocation2 + $0x88] sm:$0xff] %v918
      %983 = vst [vmem:[#allocation2 + $0x90] sm:$0xff] %v919
      %984 = vst [vmem:[#allocation2 + $0x98] sm:$0xff] %v920
      %985 = vst [vmem:[#allocation2 + $0xa0] sm:$0xff] %v921
      %986 = vst [vmem:[#allocation2 + $0xa8] sm:$0xff] %v922
      %987 = vst [vmem:[#allocation2 + $0xb0] sm:$0xff] %v923
      %988 = vst [vmem:[#allocation2 + $0xb8] sm:$0xff] %v924
      %989 = vst [vmem:[#allocation2 + $0xc0] sm:$0xff] %v925
      %990 = vst [vmem:[#allocation2 + $0xc8] sm:$0xff] %v926
      %991 = vst [vmem:[#allocation2 + $0xd0] sm:$0xff] %v927
      %992 = vst [vmem:[#allocation2 + $0xd8] sm:$0xff] %v928
      %993 = vst [vmem:[#allocation2 + $0xe0] sm:$0xff] %v929
      %994 = vst [vmem:[#allocation2 + $0xe8] sm:$0xff] %v930
      %995 = vst [vmem:[#allocation2 + $0xf0] sm:$0xff] %v931
      %996 = vst [vmem:[#allocation2 + $0xf8] sm:$0xff] %v932
      %997 = vst [vmem:[#allocation2 + $0x100] sm:$0xff] %v933
      %998 = vst [vmem:[#allocation2 + $0x108] sm:$0xff] %v934
      %999 = vst [vmem:[#allocation2 + $0x110] sm:$0xff] %v935
      %1000 = vst [vmem:[#allocation2 + $0x118] sm:$0xff] %v936
      %1001 = vst [vmem:[#allocation2 + $0x120] sm:$0xff] %v937
      %1002 = vst [vmem:[#allocation2 + $0x128] sm:$0xff] %v938
      %1003 = vst [vmem:[#allocation2 + $0x130] sm:$0xff] %v939
      %1004 = vst [vmem:[#allocation2 + $0x138] sm:$0xff] %v940
      %1005 = vst [vmem:[#allocation2 + $0x140] sm:$0xff] %v941
      %1006 = vst [vmem:[#allocation2 + $0x148] sm:$0xff] %v942
      %1007 = vst [vmem:[#allocation2 + $0x150] sm:$0xff] %v943
      %1008 = vst [vmem:[#allocation2 + $0x158] sm:$0xff] %v944
      %1009 = vst [vmem:[#allocation2 + $0x160] sm:$0xff] %v945
      %1010 = vst [vmem:[#allocation2 + $0x168] sm:$0xff] %v946
      %1011 = vst [vmem:[#allocation2 + $0x170] sm:$0xff] %v947
      %1012 = vst [vmem:[#allocation2 + $0x178] sm:$0xff] %v948
      %1013 = vst [vmem:[#allocation2 + $0x180] sm:$0xff] %v949
      %1014 = vst [vmem:[#allocation2 + $0x188] sm:$0xff] %v950
      %1015 = vst [vmem:[#allocation2 + $0x190] sm:$0xff] %v951
      %1016 = vst [vmem:[#allocation2 + $0x198] sm:$0xff] %v952
      %1017 = vst [vmem:[#allocation2 + $0x1a0] sm:$0xff] %v953
      %1018 = vst [vmem:[#allocation2 + $0x1a8] sm:$0xff] %v954
      %1019 = vst [vmem:[#allocation2 + $0x1b0] sm:$0xff] %v955
      %1020 = vst [vmem:[#allocation2 + $0x1b8] sm:$0xff] %v956
      %1021 = vst [vmem:[#allocation2 + $0x1c0] sm:$0xff] %v957
      %1022 = vst [vmem:[#allocation2 + $0x1c8] sm:$0xff] %v958
      %1023 = vst [vmem:[#allocation2 + $0x1d0] sm:$0xff] %v959
      %1024 = vst [vmem:[#allocation2 + $0x1d8] sm:$0xff] %v960
      %1025 = vst [vmem:[#allocation2 + $0x1e0] sm:$0xff] %v961
      %1026 = vst [vmem:[#allocation2 + $0x1e8] sm:$0xff] %v962
      %1027 = vst [vmem:[#allocation2 + $0x1f0] sm:$0xff] %v963
      %1028 = vst [vmem:[#allocation2 + $0x1f8] sm:$0xff] %v964
      // Predicated region
      $region37: #{_downsample_forward.1} parent=31 // pred_check
        %p1029 = pneg %p220
      $region38: #{_downsample_forward.1} parent=31 // pred_check_branch
        %1031 = sbr.rel (%p1029) target = $region40
      $region39: #{_downsample_forward.1} parent=31 // pred_region
        %v1032 = vld [vmem:[#allocation2] sm:$0xff]
        %v1033 = vld [vmem:[#allocation2 + $0x8] sm:$0xff]
        %v1034 = vld [vmem:[#allocation2 + $0x10] sm:$0xff]
        %v1035 = vld [vmem:[#allocation2 + $0x18] sm:$0xff]
        %v1036 = vld [vmem:[#allocation2 + $0x20] sm:$0xff]
        %v1037 = vld [vmem:[#allocation2 + $0x28] sm:$0xff]
        %v1038 = vld [vmem:[#allocation2 + $0x30] sm:$0xff]
        %v1039 = vld [vmem:[#allocation2 + $0x38] sm:$0xff]
        %v1040 = vld [vmem:[#allocation2 + $0x40] sm:$0xff]
        %v1041 = vld [vmem:[#allocation2 + $0x48] sm:$0xff]
        %v1042 = vld [vmem:[#allocation2 + $0x50] sm:$0xff]
        %v1043 = vld [vmem:[#allocation2 + $0x58] sm:$0xff]
        %v1044 = vld [vmem:[#allocation2 + $0x60] sm:$0xff]
        %v1045 = vld [vmem:[#allocation2 + $0x68] sm:$0xff]
        %v1046 = vld [vmem:[#allocation2 + $0x70] sm:$0xff]
        %v1047 = vld [vmem:[#allocation2 + $0x78] sm:$0xff]
        %v1048 = vld [vmem:[#allocation2 + $0x80] sm:$0xff]
        %v1049 = vld [vmem:[#allocation2 + $0x88] sm:$0xff]
        %v1050 = vld [vmem:[#allocation2 + $0x90] sm:$0xff]
        %v1051 = vld [vmem:[#allocation2 + $0x98] sm:$0xff]
        %v1052 = vld [vmem:[#allocation2 + $0xa0] sm:$0xff]
        %v1053 = vld [vmem:[#allocation2 + $0xa8] sm:$0xff]
        %v1054 = vld [vmem:[#allocation2 + $0xb0] sm:$0xff]
        %v1055 = vld [vmem:[#allocation2 + $0xb8] sm:$0xff]
        %v1056 = vld [vmem:[#allocation2 + $0xc0] sm:$0xff]
        %v1057 = vld [vmem:[#allocation2 + $0xc8] sm:$0xff]
        %v1058 = vld [vmem:[#allocation2 + $0xd0] sm:$0xff]
        %v1059 = vld [vmem:[#allocation2 + $0xd8] sm:$0xff]
        %v1060 = vld [vmem:[#allocation2 + $0xe0] sm:$0xff]
        %v1061 = vld [vmem:[#allocation2 + $0xe8] sm:$0xff]
        %v1062 = vld [vmem:[#allocation2 + $0xf0] sm:$0xff]
        %v1063 = vld [vmem:[#allocation2 + $0xf8] sm:$0xff]
        %v1064 = vld [vmem:[#allocation2 + $0x100] sm:$0xff]
        %v1065 = vld [vmem:[#allocation2 + $0x108] sm:$0xff]
        %v1066 = vld [vmem:[#allocation2 + $0x110] sm:$0xff]
        %v1067 = vld [vmem:[#allocation2 + $0x118] sm:$0xff]
        %v1068 = vld [vmem:[#allocation2 + $0x120] sm:$0xff]
        %v1069 = vld [vmem:[#allocation2 + $0x128] sm:$0xff]
        %v1070 = vld [vmem:[#allocation2 + $0x130] sm:$0xff]
        %v1071 = vld [vmem:[#allocation2 + $0x138] sm:$0xff]
        %v1072 = vld [vmem:[#allocation2 + $0x140] sm:$0xff]
        %v1073 = vld [vmem:[#allocation2 + $0x148] sm:$0xff]
        %v1074 = vld [vmem:[#allocation2 + $0x150] sm:$0xff]
        %v1075 = vld [vmem:[#allocation2 + $0x158] sm:$0xff]
        %v1076 = vld [vmem:[#allocation2 + $0x160] sm:$0xff]
        %v1077 = vld [vmem:[#allocation2 + $0x168] sm:$0xff]
        %v1078 = vld [vmem:[#allocation2 + $0x170] sm:$0xff]
        %v1079 = vld [vmem:[#allocation2 + $0x178] sm:$0xff]
        %v1080 = vld [vmem:[#allocation2 + $0x180] sm:$0xff]
        %v1081 = vld [vmem:[#allocation2 + $0x188] sm:$0xff]
        %v1082 = vld [vmem:[#allocation2 + $0x190] sm:$0xff]
        %v1083 = vld [vmem:[#allocation2 + $0x198] sm:$0xff]
        %v1084 = vld [vmem:[#allocation2 + $0x1a0] sm:$0xff]
        %v1085 = vld [vmem:[#allocation2 + $0x1a8] sm:$0xff]
        %v1086 = vld [vmem:[#allocation2 + $0x1b0] sm:$0xff]
        %v1087 = vld [vmem:[#allocation2 + $0x1b8] sm:$0xff]
        %v1088 = vld [vmem:[#allocation2 + $0x1c0] sm:$0xff]
        %v1089 = vld [vmem:[#allocation2 + $0x1c8] sm:$0xff]
        %v1090 = vld [vmem:[#allocation2 + $0x1d0] sm:$0xff]
        %v1091 = vld [vmem:[#allocation2 + $0x1d8] sm:$0xff]
        %v1092 = vld [vmem:[#allocation2 + $0x1e0] sm:$0xff]
        %v1093 = vld [vmem:[#allocation2 + $0x1e8] sm:$0xff]
        %v1094 = vld [vmem:[#allocation2 + $0x1f0] sm:$0xff]
        %v1095 = vld [vmem:[#allocation2 + $0x1f8] sm:$0xff]
        %v1096 = vld [vmem:[%s2] sm:$0x1]
        %v1098 = vperm.slane %v1096, 0
        %v1100 = vadd.f32 %v1032, %v1098
        %v1101 = vadd.f32 %v1033, %v1098
        %v1102 = vadd.f32 %v1034, %v1098
        %v1103 = vadd.f32 %v1035, %v1098
        %v1104 = vadd.f32 %v1036, %v1098
        %v1105 = vadd.f32 %v1037, %v1098
        %v1106 = vadd.f32 %v1038, %v1098
        %v1107 = vadd.f32 %v1039, %v1098
        %v1108 = vadd.f32 %v1040, %v1098
        %v1109 = vadd.f32 %v1041, %v1098
        %v1110 = vadd.f32 %v1042, %v1098
        %v1111 = vadd.f32 %v1043, %v1098
        %v1112 = vadd.f32 %v1044, %v1098
        %v1113 = vadd.f32 %v1045, %v1098
        %v1114 = vadd.f32 %v1046, %v1098
        %v1115 = vadd.f32 %v1047, %v1098
        %v1116 = vadd.f32 %v1048, %v1098
        %v1117 = vadd.f32 %v1049, %v1098
        %v1118 = vadd.f32 %v1050, %v1098
        %v1119 = vadd.f32 %v1051, %v1098
        %v1120 = vadd.f32 %v1052, %v1098
        %v1121 = vadd.f32 %v1053, %v1098
        %v1122 = vadd.f32 %v1054, %v1098
        %v1123 = vadd.f32 %v1055, %v1098
        %v1124 = vadd.f32 %v1056, %v1098
        %v1125 = vadd.f32 %v1057, %v1098
        %v1126 = vadd.f32 %v1058, %v1098
        %v1127 = vadd.f32 %v1059, %v1098
        %v1128 = vadd.f32 %v1060, %v1098
        %v1129 = vadd.f32 %v1061, %v1098
        %v1130 = vadd.f32 %v1062, %v1098
        %v1131 = vadd.f32 %v1063, %v1098
        %v1132 = vadd.f32 %v1064, %v1098
        %v1133 = vadd.f32 %v1065, %v1098
        %v1134 = vadd.f32 %v1066, %v1098
        %v1135 = vadd.f32 %v1067, %v1098
        %v1136 = vadd.f32 %v1068, %v1098
        %v1137 = vadd.f32 %v1069, %v1098
        %v1138 = vadd.f32 %v1070, %v1098
        %v1139 = vadd.f32 %v1071, %v1098
        %v1140 = vadd.f32 %v1072, %v1098
        %v1141 = vadd.f32 %v1073, %v1098
        %v1142 = vadd.f32 %v1074, %v1098
        %v1143 = vadd.f32 %v1075, %v1098
        %v1144 = vadd.f32 %v1076, %v1098
        %v1145 = vadd.f32 %v1077, %v1098
        %v1146 = vadd.f32 %v1078, %v1098
        %v1147 = vadd.f32 %v1079, %v1098
        %v1148 = vadd.f32 %v1080, %v1098
        %v1149 = vadd.f32 %v1081, %v1098
        %v1150 = vadd.f32 %v1082, %v1098
        %v1151 = vadd.f32 %v1083, %v1098
        %v1152 = vadd.f32 %v1084, %v1098
        %v1153 = vadd.f32 %v1085, %v1098
        %v1154 = vadd.f32 %v1086, %v1098
        %v1155 = vadd.f32 %v1087, %v1098
        %v1156 = vadd.f32 %v1088, %v1098
        %v1157 = vadd.f32 %v1089, %v1098
        %v1158 = vadd.f32 %v1090, %v1098
        %v1159 = vadd.f32 %v1091, %v1098
        %v1160 = vadd.f32 %v1092, %v1098
        %v1161 = vadd.f32 %v1093, %v1098
        %v1162 = vadd.f32 %v1094, %v1098
        %v1163 = vadd.f32 %v1095, %v1098
        %1164 = vst [vmem:[%s217] sm:$0xff] %v1100
        %1165 = vst [vmem:[%s217 + $0x8] sm:$0xff] %v1101
        %1166 = vst [vmem:[%s217 + $0x10] sm:$0xff] %v1102
        %1167 = vst [vmem:[%s217 + $0x18] sm:$0xff] %v1103
        %1168 = vst [vmem:[%s217 + $0x20] sm:$0xff] %v1104
        %1169 = vst [vmem:[%s217 + $0x28] sm:$0xff] %v1105
        %1170 = vst [vmem:[%s217 + $0x30] sm:$0xff] %v1106
        %1171 = vst [vmem:[%s217 + $0x38] sm:$0xff] %v1107
        %1172 = vst [vmem:[%s217 + $0x40] sm:$0xff] %v1108
        %1173 = vst [vmem:[%s217 + $0x48] sm:$0xff] %v1109
        %1174 = vst [vmem:[%s217 + $0x50] sm:$0xff] %v1110
        %1175 = vst [vmem:[%s217 + $0x58] sm:$0xff] %v1111
        %1176 = vst [vmem:[%s217 + $0x60] sm:$0xff] %v1112
        %1177 = vst [vmem:[%s217 + $0x68] sm:$0xff] %v1113
        %1178 = vst [vmem:[%s217 + $0x70] sm:$0xff] %v1114
        %1179 = vst [vmem:[%s217 + $0x78] sm:$0xff] %v1115
        %1180 = vst [vmem:[%s217 + $0x80] sm:$0xff] %v1116
        %1181 = vst [vmem:[%s217 + $0x88] sm:$0xff] %v1117
        %1182 = vst [vmem:[%s217 + $0x90] sm:$0xff] %v1118
        %1183 = vst [vmem:[%s217 + $0x98] sm:$0xff] %v1119
        %1184 = vst [vmem:[%s217 + $0xa0] sm:$0xff] %v1120
        %1185 = vst [vmem:[%s217 + $0xa8] sm:$0xff] %v1121
        %1186 = vst [vmem:[%s217 + $0xb0] sm:$0xff] %v1122
        %1187 = vst [vmem:[%s217 + $0xb8] sm:$0xff] %v1123
        %1188 = vst [vmem:[%s217 + $0xc0] sm:$0xff] %v1124
        %1189 = vst [vmem:[%s217 + $0xc8] sm:$0xff] %v1125
        %1190 = vst [vmem:[%s217 + $0xd0] sm:$0xff] %v1126
        %1191 = vst [vmem:[%s217 + $0xd8] sm:$0xff] %v1127
        %1192 = vst [vmem:[%s217 + $0xe0] sm:$0xff] %v1128
        %1193 = vst [vmem:[%s217 + $0xe8] sm:$0xff] %v1129
        %1194 = vst [vmem:[%s217 + $0xf0] sm:$0xff] %v1130
        %1195 = vst [vmem:[%s217 + $0xf8] sm:$0xff] %v1131
        %1196 = vst [vmem:[%s217 + $0x100] sm:$0xff] %v1132
        %1197 = vst [vmem:[%s217 + $0x108] sm:$0xff] %v1133
        %1198 = vst [vmem:[%s217 + $0x110] sm:$0xff] %v1134
        %1199 = vst [vmem:[%s217 + $0x118] sm:$0xff] %v1135
        %1200 = vst [vmem:[%s217 + $0x120] sm:$0xff] %v1136
        %1201 = vst [vmem:[%s217 + $0x128] sm:$0xff] %v1137
        %1202 = vst [vmem:[%s217 + $0x130] sm:$0xff] %v1138
        %1203 = vst [vmem:[%s217 + $0x138] sm:$0xff] %v1139
        %1204 = vst [vmem:[%s217 + $0x140] sm:$0xff] %v1140
        %1205 = vst [vmem:[%s217 + $0x148] sm:$0xff] %v1141
        %1206 = vst [vmem:[%s217 + $0x150] sm:$0xff] %v1142
        %1207 = vst [vmem:[%s217 + $0x158] sm:$0xff] %v1143
        %1208 = vst [vmem:[%s217 + $0x160] sm:$0xff] %v1144
        %1209 = vst [vmem:[%s217 + $0x168] sm:$0xff] %v1145
        %1210 = vst [vmem:[%s217 + $0x170] sm:$0xff] %v1146
        %1211 = vst [vmem:[%s217 + $0x178] sm:$0xff] %v1147
        %1212 = vst [vmem:[%s217 + $0x180] sm:$0xff] %v1148
        %1213 = vst [vmem:[%s217 + $0x188] sm:$0xff] %v1149
        %1214 = vst [vmem:[%s217 + $0x190] sm:$0xff] %v1150
        %1215 = vst [vmem:[%s217 + $0x198] sm:$0xff] %v1151
        %1216 = vst [vmem:[%s217 + $0x1a0] sm:$0xff] %v1152
        %1217 = vst [vmem:[%s217 + $0x1a8] sm:$0xff] %v1153
        %1218 = vst [vmem:[%s217 + $0x1b0] sm:$0xff] %v1154
        %1219 = vst [vmem:[%s217 + $0x1b8] sm:$0xff] %v1155
        %1220 = vst [vmem:[%s217 + $0x1c0] sm:$0xff] %v1156
        %1221 = vst [vmem:[%s217 + $0x1c8] sm:$0xff] %v1157
        %1222 = vst [vmem:[%s217 + $0x1d0] sm:$0xff] %v1158
        %1223 = vst [vmem:[%s217 + $0x1d8] sm:$0xff] %v1159
        %1224 = vst [vmem:[%s217 + $0x1e0] sm:$0xff] %v1160
        %1225 = vst [vmem:[%s217 + $0x1e8] sm:$0xff] %v1161
        %1226 = vst [vmem:[%s217 + $0x1f0] sm:$0xff] %v1162
        %1227 = vst [vmem:[%s217 + $0x1f8] sm:$0xff] %v1163
      $region40: #{_downsample_forward.1} parent=31 // pred_fallthru
        _
      %s1228 = smul.u32 64, %s18
      %p1229 = scmp.lt.s32.totalorder %s1228, 127
      %s1230 = scalar_select %p1229, %s1228, 127
      %s1231 = smul.addr %s1230, 8
      %s1232 = scalar_lea.vmem %s3, %s1231
      // Predicated region
      $region41: #{_downsample_forward.1} parent=31 // pred_check
        %p1233 = pneg %p119
      $region42: #{_downsample_forward.1} parent=31 // pred_check_branch
        %1235 = sbr.rel (%p1233) target = $region44
      $region43: #{_downsample_forward.1} parent=31 // pred_region
        %s1236 = smul.u32 64, %s18
      $region44: #{_downsample_forward.1} parent=31 // pred_fallthru
        _
    $region32: #{_downsample_forward.1} parent=5 // pred_fallthru
      _
    %p1237 = scmp.le.s32.totalorder 2, %s9
    // Predicated region
    $region45: #{_downsample_forward.1} parent=5 // pred_check
      %p1238 = pneg %p1237
    $region46: #{_downsample_forward.1} parent=5 // pred_check_branch
      %1240 = sbr.rel (%p1238) target = $region48
    $region47: #{_downsample_forward.1} parent=5 // pred_region
      %s1241 = ssub.s32 %s9, 2
      // Predicated region
      $region49: #{_downsample_forward.1} parent=47 // pred_check
        %p1242 = pneg %p125
      $region50: #{_downsample_forward.1} parent=47 // pred_check_branch
        %1244 = sbr.rel (%p1242) target = $region52
      $region51: #{_downsample_forward.1} parent=47 // pred_region
        %s1245 = smul.u32 64, %s20
        %p1246 = scmp.lt.s32.totalorder %s1245, 127
        %s1247 = scalar_select %p1246, %s1245, 127
        %s1248 = smul.addr %s1247, 8
        %s1249 = scalar_lea.vmem %s3, %s1248
      $region52: #{_downsample_forward.1} parent=47 // pred_fallthru
        _
    $region48: #{_downsample_forward.1} parent=5 // pred_fallthru
      _
  $region6: #{_downsample_forward.1} parent=0 // loop_footer
    %s13 = sadd.s32 1, %s9
  $region7: #{_downsample_forward.1} parent=0 // loop_footer_branch
    %8 = sbr.rel target = $region3
  $region8: #{_downsample_forward.1} parent=0 // loop_exit
    _

</llo_original>
